<compile_context>
chip_gen: v7x
topology: tpu7x:2x2x1
jax: 0.10.0
libtpu: 0.0.40
codegen_flags: <defaults>
</compile_context>

<pallas_src>
import functools

import jax
import jax.numpy as jnp
from jax.experimental import pallas as pl
from jax.experimental.pallas import tpu as pltpu

GAMMA = 2          # focal exponent; == 2, so pow() is strength-reduced to squares
EPS = 1e-10


def _cdiv(a, b):
    return -(-a // b)


def _round_up(a, m):
    return _cdiv(a, m) * m


def _ordinal_loss_kernel(x_ref, y_ref, tri_ref, out_ref, acc_ce_ref, acc_emd_ref,
                         *, inv_batch):
    i = pl.program_id(1)                      # inner ("arbitrary") batch-tile index

    @pl.when(i == 0)
    def _init():
        acc_ce_ref[...] = jnp.zeros_like(acc_ce_ref)
        acc_emd_ref[...] = jnp.zeros_like(acc_emd_ref)

    x = x_ref[...].astype(jnp.float32)
    y = y_ref[...].astype(jnp.float32)

    # ---- focal-style ordinal cross-entropy (gamma == 2 -> explicit squares) ----
    one_minus_x = 1.0 - x
    one_minus_y = 1.0 - y
    term = (one_minus_x * one_minus_x) * jnp.log(x + EPS) * y \
         + (x * x) * jnp.log(one_minus_x + EPS) * one_minus_y
    # Per-lane (per-class) partial sums only; the cross-lane reduce and the
    # divide by the *global* batch size happen at finalize / in the wrapper.
    acc_ce_ref[...] += jnp.sum(term, axis=0, keepdims=True)

    # ---- softmax along the class axis (axis=1 == lanes) ----
    def _softmax(v):
        m = jnp.max(v, axis=1, keepdims=True)
        e = jnp.exp(v - m)
        # Exact reciprocal: the divide is per-row (1/C of elements), so it is
        # not on the EUP critical path; keep full accuracy.
        return e * pl.reciprocal(jnp.sum(e, axis=1, keepdims=True), approx=False)

    d = _softmax(x) - _softmax(y)

    # ---- cumsum along classes == matmul with resident upper-triangular ones (MXU) ----
    cum_d = jnp.dot(d, tri_ref[...], preferred_element_type=jnp.float32)
    acc_emd_ref[...] += jnp.sum(cum_d * cum_d, axis=0, keepdims=True)

    @pl.when(i == pl.num_programs(1) - 1)
    def _finalize():
        C = acc_ce_ref.shape[1]
        row = jax.lax.broadcasted_iota(jnp.int32, (8, C), 0)
        ce_row = (row == 0).astype(jnp.float32)       # row 0 <- ce per-lane partials
        emd_row = (row == 1).astype(jnp.float32)      # row 1 <- emd per-lane partials
        out_ref[0] = ce_row * (acc_ce_ref[...] * (-inv_batch)) \
                   + emd_row * acc_emd_ref[...]


def ordinal_loss(x, y, *, tile_b=2048, num_cores=2):
    """x, y: (B, C) arrays (f32 or bf16). Returns (ce, emd) float32 scalars."""
    assert x.shape == y.shape and x.ndim == 2
    B, C = x.shape

    # Tile sizing:
    #   * at most `tile_b` rows,
    #   * at most ~2 MiB of f32 per input tile (so 2 inputs x 2 pipeline
    #     buffers + tri + scratch stay far below the default scoped-VMEM
    #     limit on every chip, incl. v7x),
    #   * shrunk + rounded to a multiple of 8 sublanes for tiny B.
    per_core = _cdiv(B, num_cores)
    rows_by_bytes = max(8, ((2 * 1024 * 1024) // (C * 4)) // 8 * 8)
    tb = min(tile_b, rows_by_bytes, _round_up(max(per_core, 8), 8))
    num_tiles = _cdiv(B, num_cores * tb)
    b_pad = num_cores * num_tiles * tb
    if b_pad != B:
        # Zero rows in *both* x and y contribute exactly 0 to CE and EMD
        # (CE terms are multiplied by y resp. x which are 0 there; softmaxes
        # of identical zero rows cancel in the EMD difference).
        pad = ((0, b_pad - B), (0, 0))
        x = jnp.pad(x, pad)
        y = jnp.pad(y, pad)

    # Upper-triangular ones: cumsum(v, axis=1) == v @ T with T[k, c] = [k <= c].
    idx = jnp.arange(C)
    tri = (idx[:, None] <= idx[None, :]).astype(jnp.float32)

    kernel = functools.partial(_ordinal_loss_kernel, inv_batch=1.0 / B)

    out = pl.pallas_call(
        kernel,
        out_shape=jax.ShapeDtypeStruct((num_cores, 8, C), jnp.float32),
        grid_spec=pltpu.PrefetchScalarGridSpec(
            num_scalar_prefetch=0,
            grid=(num_cores, num_tiles),
            in_specs=[
                pl.BlockSpec((tb, C), lambda c, i: (c * num_tiles + i, 0)),
                pl.BlockSpec((tb, C), lambda c, i: (c * num_tiles + i, 0)),
                pl.BlockSpec((C, C), lambda c, i: (0, 0)),   # tri: VMEM-resident
            ],
            out_specs=pl.BlockSpec((1, 8, C), lambda c, i: (c, 0, 0)),
            scratch_shapes=[
                pltpu.VMEM((1, C), jnp.float32),   # per-lane CE accumulator
                pltpu.VMEM((1, C), jnp.float32),   # per-lane EMD accumulator
            ],
        ),
        compiler_params=pltpu.CompilerParams(
            dimension_semantics=("parallel", "arbitrary"),
        ),
    )(x, y, tri)

    # Per-core, per-lane partials -> scalars (tiny reduce, done in plain JAX).
    ce = jnp.sum(out[:, 0, :])
    emd = jnp.sum(out[:, 1, :])
    return ce, emd


def ordinal_loss_ref(x, y):
    """Pure-JAX reference mirroring the PyTorch module, for sanity checking."""
    x = x.astype(jnp.float32)
    y = y.astype(jnp.float32)
    B = x.shape[0]
    ce = -jnp.sum(
        (1.0 - x) ** GAMMA * jnp.log(x + EPS) * y
        + x ** GAMMA * jnp.log(1.0 - x + EPS) * (1.0 - y)
    ) / B
    x_cs = jnp.cumsum(jax.nn.softmax(x, axis=1), axis=1)
    y_cs = jnp.cumsum(jax.nn.softmax(y, axis=1), axis=1)
    emd = jnp.sum((x_cs - y_cs) ** 2)
    return ce, emd


if __name__ == "__main__":
    key = jax.random.PRNGKey(0)
    kx, ky = jax.random.split(key)
    B, C = 24, 128  # small demo shape; B=24 exercises padding + the 2-way core split

    # x behaves like per-class probabilities in (0, 1); y like soft targets.
    x = jax.random.uniform(kx, (B, C), dtype=jnp.float32, minval=0.01, maxval=0.99)
    y = jax.random.uniform(ky, (B, C), dtype=jnp.float32, minval=0.0, maxval=1.0)

    ce, emd = ordinal_loss(x, y)
    jax.block_until_ready((ce, emd))

    ce_ref, emd_ref = ordinal_loss_ref(x, y)
    assert jnp.allclose(ce, ce_ref, rtol=1e-4, atol=1e-4), (ce, ce_ref)
    assert jnp.allclose(emd, emd_ref, rtol=1e-4, atol=1e-4), (emd, emd_ref)

    print("KERNEL_OK")
</pallas_src>

<mosaic_0001>
module attributes {stable_mosaic.version = 11 : i64} {
  func.func @_ordinal_loss_kernel(%arg0: i32, %arg1: i32, %arg2: memref<16x128xf32, #tpu.memory_space<vmem>>, %arg3: memref<16x128xf32, #tpu.memory_space<vmem>>, %arg4: memref<128x128xf32, #tpu.memory_space<vmem>>, %arg5: memref<1x8x128xf32, #tpu.memory_space<vmem>>, %arg6: memref<1x128xf32, #tpu.memory_space<vmem>>, %arg7: memref<1x128xf32, #tpu.memory_space<vmem>>) attributes {dimension_semantics = [#tpu.dimension_semantics<parallel>, #tpu.dimension_semantics<arbitrary>], iteration_bounds = array<i64: 2, 1>, scalar_prefetch = 0 : i64, scratch_operands = 2 : i64, tpu.core_type = #tpu.core_type<tc>, window_params = [{transform_indices = @transform_0, window_bounds = array<i64: 16, 128>}, {transform_indices = @transform_1, window_bounds = array<i64: 16, 128>}, {pipeline_mode = #tpu.pipeline_mode<synchronous>, transform_indices = @transform_2, window_bounds = array<i64: 128, 128>}, {transform_indices = @transform_3, window_bounds = array<i64: 1, 8, 128>}]} {
    %c0_i32 = arith.constant 0 : i32
    %0 = arith.cmpi eq, %arg1, %c0_i32 : i32
    %1 = arith.extui %0 : i1 to i32
    %c0_i32_0 = arith.constant 0 : i32
    %2 = arith.cmpi ne, %1, %c0_i32_0 : i32
    scf.if %2 {
      %cst_26 = arith.constant 0.000000e+00 : f32
      %59 = vector.broadcast %cst_26 : f32 to vector<1x128xf32>
      %c0_27 = arith.constant 0 : index
      %c0_28 = arith.constant 0 : index
      %60 = vector.load %arg6[%c0_27, %c0_28] : memref<1x128xf32, #tpu.memory_space<vmem>>, vector<1x128xf32>
      tpu.vector_store %arg6[%c0_27, %c0_28], %59 {strides = array<i32>} : memref<1x128xf32, #tpu.memory_space<vmem>>, vector<1x128xf32>,
      %cst_29 = arith.constant 0.000000e+00 : f32
      %61 = vector.broadcast %cst_29 : f32 to vector<1x128xf32>
      %c0_30 = arith.constant 0 : index
      %c0_31 = arith.constant 0 : index
      %62 = vector.load %arg7[%c0_30, %c0_31] : memref<1x128xf32, #tpu.memory_space<vmem>>, vector<1x128xf32>
      tpu.vector_store %arg7[%c0_30, %c0_31], %61 {strides = array<i32>} : memref<1x128xf32, #tpu.memory_space<vmem>>, vector<1x128xf32>,
    } else {
    }
    %c0 = arith.constant 0 : index
    %c0_1 = arith.constant 0 : index
    %3 = vector.load %arg2[%c0, %c0_1] : memref<16x128xf32, #tpu.memory_space<vmem>>, vector<16x128xf32>
    %c0_2 = arith.constant 0 : index
    %c0_3 = arith.constant 0 : index
    %4 = vector.load %arg3[%c0_2, %c0_3] : memref<16x128xf32, #tpu.memory_space<vmem>>, vector<16x128xf32>
    %cst = arith.constant 1.000000e+00 : f32
    %5 = vector.broadcast %cst : f32 to vector<16x128xf32>
    %6 = arith.subf %5, %3 : vector<16x128xf32>
    %cst_4 = arith.constant 1.000000e+00 : f32
    %7 = vector.broadcast %cst_4 : f32 to vector<16x128xf32>
    %8 = arith.subf %7, %4 : vector<16x128xf32>
    %9 = arith.mulf %6, %6 : vector<16x128xf32>
    %cst_5 = arith.constant 1.000000e-10 : f32
    %10 = vector.broadcast %cst_5 : f32 to vector<16x128xf32>
    %11 = arith.addf %3, %10 : vector<16x128xf32>
    %12 = math.log %11 : vector<16x128xf32>
    %13 = arith.mulf %9, %12 : vector<16x128xf32>
    %14 = arith.mulf %13, %4 : vector<16x128xf32>
    %15 = arith.mulf %3, %3 : vector<16x128xf32>
    %cst_6 = arith.constant 1.000000e-10 : f32
    %16 = vector.broadcast %cst_6 : f32 to vector<16x128xf32>
    %17 = arith.addf %6, %16 : vector<16x128xf32>
    %18 = math.log %17 : vector<16x128xf32>
    %19 = arith.mulf %15, %18 : vector<16x128xf32>
    %20 = arith.mulf %19, %8 : vector<16x128xf32>
    %21 = arith.addf %14, %20 : vector<16x128xf32>
    %c0_7 = arith.constant 0 : index
    %c0_8 = arith.constant 0 : index
    %22 = vector.load %arg6[%c0_7, %c0_8] : memref<1x128xf32, #tpu.memory_space<vmem>>, vector<1x128xf32>
    %cst_9 = arith.constant dense<0.000000e+00> : vector<128xf32>
    %23 = vector.multi_reduction <add>, %21, %cst_9 [0] : vector<16x128xf32> to vector<128xf32>
    %24 = vector.shape_cast %23 : vector<128xf32> to vector<1x128xf32>
    %25 = arith.addf %22, %24 : vector<1x128xf32>
    %c0_10 = arith.constant 0 : index
    %c0_11 = arith.constant 0 : index
    %26 = vector.load %arg6[%c0_10, %c0_11] : memref<1x128xf32, #tpu.memory_space<vmem>>, vector<1x128xf32>
    tpu.vector_store %arg6[%c0_10, %c0_11], %25 {strides = array<i32>} : memref<1x128xf32, #tpu.memory_space<vmem>>, vector<1x128xf32>,
    %cst_12 = arith.constant dense<0xFF800000> : vector<16xf32>
    %27 = vector.multi_reduction <maximumf>, %3, %cst_12 [1] : vector<16x128xf32> to vector<16xf32>
    %28 = vector.shape_cast %27 : vector<16xf32> to vector<16x1xf32>
    %29 = vector.broadcast %28 : vector<16x1xf32> to vector<16x128xf32>
    %30 = arith.subf %3, %29 : vector<16x128xf32>
    %31 = math.exp %30 : vector<16x128xf32>
    %cst_13 = arith.constant dense<0.000000e+00> : vector<16xf32>
    %32 = vector.multi_reduction <add>, %31, %cst_13 [1] : vector<16x128xf32> to vector<16xf32>
    %33 = vector.shape_cast %32 : vector<16xf32> to vector<16x1xf32>
    %34 = tpu.reciprocal %33 : vector<16x1xf32> -> vector<16x1xf32>
    %35 = vector.broadcast %34 : vector<16x1xf32> to vector<16x128xf32>
    %36 = arith.mulf %31, %35 : vector<16x128xf32>
    %cst_14 = arith.constant dense<0xFF800000> : vector<16xf32>
    %37 = vector.multi_reduction <maximumf>, %4, %cst_14 [1] : vector<16x128xf32> to vector<16xf32>
    %38 = vector.shape_cast %37 : vector<16xf32> to vector<16x1xf32>
    %39 = vector.broadcast %38 : vector<16x1xf32> to vector<16x128xf32>
    %40 = arith.subf %4, %39 : vector<16x128xf32>
    %41 = math.exp %40 : vector<16x128xf32>
    %cst_15 = arith.constant dense<0.000000e+00> : vector<16xf32>
    %42 = vector.multi_reduction <add>, %41, %cst_15 [1] : vector<16x128xf32> to vector<16xf32>
    %43 = vector.shape_cast %42 : vector<16xf32> to vector<16x1xf32>
    %44 = tpu.reciprocal %43 : vector<16x1xf32> -> vector<16x1xf32>
    %45 = vector.broadcast %44 : vector<16x1xf32> to vector<16x128xf32>
    %46 = arith.mulf %41, %45 : vector<16x128xf32>
    %47 = arith.subf %36, %46 : vector<16x128xf32>
    %c0_16 = arith.constant 0 : index
    %c0_17 = arith.constant 0 : index
    %48 = vector.load %arg4[%c0_16, %c0_17] : memref<128x128xf32, #tpu.memory_space<vmem>>, vector<128x128xf32>
    %cst_18 = arith.constant dense<0.000000e+00> : vector<16x128xf32>
    %49 = tpu.matmul %47, %48, %cst_18 {dimension_numbers = #tpu.dot_dimension_numbers<[1], [0], [0], [1], [0, 0, 1, 1], [], []>} : vector<16x128xf32>, vector<128x128xf32>, vector<16x128xf32> -> vector<16x128xf32>
    %c0_19 = arith.constant 0 : index
    %c0_20 = arith.constant 0 : index
    %50 = vector.load %arg7[%c0_19, %c0_20] : memref<1x128xf32, #tpu.memory_space<vmem>>, vector<1x128xf32>
    %51 = arith.mulf %49, %49 : vector<16x128xf32>
    %cst_21 = arith.constant dense<0.000000e+00> : vector<128xf32>
    %52 = vector.multi_reduction <add>, %51, %cst_21 [0] : vector<16x128xf32> to vector<128xf32>
    %53 = vector.shape_cast %52 : vector<128xf32> to vector<1x128xf32>
    %54 = arith.addf %50, %53 : vector<1x128xf32>
    %c0_22 = arith.constant 0 : index
    %c0_23 = arith.constant 0 : index
    %55 = vector.load %arg7[%c0_22, %c0_23] : memref<1x128xf32, #tpu.memory_space<vmem>>, vector<1x128xf32>
    tpu.vector_store %arg7[%c0_22, %c0_23], %54 {strides = array<i32>} : memref<1x128xf32, #tpu.memory_space<vmem>>, vector<1x128xf32>,
    %c0_i32_24 = arith.constant 0 : i32
    %56 = arith.cmpi eq, %arg1, %c0_i32_24 : i32
    %57 = arith.extui %56 : i1 to i32
    %c0_i32_25 = arith.constant 0 : i32
    %58 = arith.cmpi ne, %57, %c0_i32_25 : i32
    scf.if %58 {
      %59 = tpu.iota {dimensions = array<i32: 0>} : vector<8x128xi32>
      %c0_i32_26 = arith.constant 0 : i32
      %60 = vector.broadcast %c0_i32_26 : i32 to vector<8x128xi32>
      %61 = arith.cmpi eq, %59, %60 : vector<8x128xi32>
      %62 = arith.extui %61 : vector<8x128xi1> to vector<8x128xi32>
      %63 = arith.sitofp %62 : vector<8x128xi32> to vector<8x128xf32>
      %c1_i32 = arith.constant 1 : i32
      %64 = vector.broadcast %c1_i32 : i32 to vector<8x128xi32>
      %65 = arith.cmpi eq, %59, %64 : vector<8x128xi32>
      %66 = arith.extui %65 : vector<8x128xi1> to vector<8x128xi32>
      %67 = arith.sitofp %66 : vector<8x128xi32> to vector<8x128xf32>
      %c0_27 = arith.constant 0 : index
      %c0_28 = arith.constant 0 : index
      %68 = vector.load %arg6[%c0_27, %c0_28] : memref<1x128xf32, #tpu.memory_space<vmem>>, vector<1x128xf32>
      %cst_29 = arith.constant -0.0416666679 : f32
      %69 = vector.broadcast %cst_29 : f32 to vector<1x128xf32>
      %70 = arith.mulf %68, %69 : vector<1x128xf32>
      %71 = vector.broadcast %70 : vector<1x128xf32> to vector<8x128xf32>
      %72 = arith.mulf %63, %71 : vector<8x128xf32>
      %c0_30 = arith.constant 0 : index
      %c0_31 = arith.constant 0 : index
      %73 = vector.load %arg7[%c0_30, %c0_31] : memref<1x128xf32, #tpu.memory_space<vmem>>, vector<1x128xf32>
      %74 = vector.broadcast %73 : vector<1x128xf32> to vector<8x128xf32>
      %75 = arith.mulf %67, %74 : vector<8x128xf32>
      %76 = arith.addf %72, %75 : vector<8x128xf32>
      %c0_32 = arith.constant 0 : index
      %c0_33 = arith.constant 0 : index
      %c0_34 = arith.constant 0 : index
      %77 = vector.load %arg5[%c0_32, %c0_33, %c0_34] : memref<1x8x128xf32, #tpu.memory_space<vmem>>, vector<1x8x128xf32>
      %78 = vector.shape_cast %77 : vector<1x8x128xf32> to vector<8x128xf32>
      %79 = vector.shape_cast %76 : vector<8x128xf32> to vector<1x8x128xf32>
      tpu.vector_store %arg5[%c0_32, %c0_33, %c0_34], %79 {strides = array<i32>} : memref<1x8x128xf32, #tpu.memory_space<vmem>>, vector<1x8x128xf32>,
    } else {
    }
    return
  }
  func.func @transform_0(%arg0: i32, %arg1: i32) -> (i32, i32) {
    %c1_i32 = arith.constant 1 : i32
    %0 = arith.muli %arg0, %c1_i32 : i32
    %1 = arith.addi %0, %arg1 : i32
    %c0_i32 = arith.constant 0 : i32
    %c0_i32_0 = arith.constant 0 : i32
    return %1, %c0_i32 : i32, i32
  }
  func.func @transform_1(%arg0: i32, %arg1: i32) -> (i32, i32) {
    %c1_i32 = arith.constant 1 : i32
    %0 = arith.muli %arg0, %c1_i32 : i32
    %1 = arith.addi %0, %arg1 : i32
    %c0_i32 = arith.constant 0 : i32
    %c0_i32_0 = arith.constant 0 : i32
    return %1, %c0_i32 : i32, i32
  }
  func.func @transform_2(%arg0: i32, %arg1: i32) -> (i32, i32) {
    %c0_i32 = arith.constant 0 : i32
    %c0_i32_0 = arith.constant 0 : i32
    %c0_i32_1 = arith.constant 0 : i32
    return %c0_i32, %c0_i32_0 : i32, i32
  }
  func.func @transform_3(%arg0: i32, %arg1: i32) -> (i32, i32, i32) {
    %c0_i32 = arith.constant 0 : i32
    %c0_i32_0 = arith.constant 0 : i32
    %c0_i32_1 = arith.constant 0 : i32
    return %arg0, %c0_i32, %c0_i32_0 : i32, i32, i32
  }
}

</mosaic_0001>

<llo_original>
// kernel: tpu_custom_call.1
$region0: #{tpu_custom_call.1}
  #allocation0 [shape = 'u32[]', space=smem, size = 0x4, offset = 0x4, fixed_abs, tag = 'smem constant byte address 0x4 - core index']
  #allocation1 [shape = 'u32[144,128]{1,0:T(1,128)}', space=vmem, size = 0x12000, scoped, tag = 'internal scratch']
  #allocation2 [shape = 'f32[1,128]{1,0:T(1,128)}', space=vmem, size = 0x200, scoped, tag = 'scratch operand']
  #allocation3 [shape = 'f32[1,128]{1,0:T(1,128)}', space=vmem, size = 0x200, scoped, tag = 'scratch operand']
  %s0 = inlined_call_operand.hbm [shape: f32[32,128], index: 0, kind: input, shape index: {}]
  %s1 = inlined_call_operand.hbm [shape: f32[32,128], index: 1, kind: input, shape index: {}]
  %s2 = inlined_call_operand.hbm [shape: f32[128,128], index: 2, kind: input, shape index: {}]
  %s3 = inlined_call_operand.hbm [shape: f32[2,8,128], index: 3, kind: output, shape index: {}]
  %s4 = sld [smem:[#allocation0]]
  $region65: #{tpu_custom_call.1} parent=0
    _
  %s6 = ssub.s32 1, %s4
  %s7 = scalar_select 0, %s6, %s4
  $region1: #{tpu_custom_call.1} parent=0
    #allocation4 [shape = 'u8[16384]{0}', space=vmem, size = 0x4000, scoped, tag = 'input window, operand 0']
    #allocation5 [shape = 's32[2]{0}', space=sflag, size = 0x8, scoped, tag = 'scoped memory for tpu_custom_call.1']
    #allocation6 [shape = 's32[2]{0}', space=sflag, size = 0x8, scoped, tag = 'scoped memory for tpu_custom_call.1']
    #allocation7 [shape = 'u8[16384]{0}', space=vmem, size = 0x4000, scoped, tag = 'input window, operand 1']
    #allocation8 [shape = 's32[2]{0}', space=sflag, size = 0x8, scoped, tag = 'scoped memory for tpu_custom_call.1']
    #allocation9 [shape = 'u8[65536]{0}', space=vmem, size = 0x10000, scoped, tag = 'input window, operand 2, single buffered']
    #allocation10 [shape = 'u8[8192]{0}', space=vmem, size = 0x2000, scoped, tag = 'output window, operand 0']
    %8 = vsyncpa [#allocation5], 0
    %s9 = scalar_lea.sflag [#allocation5], 1
    %10 = vsyncpa %s9, 0
    %11 = vsyncpa [#allocation8], 0
    %s12 = scalar_lea.sflag [#allocation8], 1
    %13 = vsyncpa %s12, 0
    %14 = vsyncpa [#allocation6], 0
    %s15 = scalar_lea.sflag [#allocation6], 1
    %16 = vsyncpa %s15, 0
    loop: start=0, step=1, limit=4
    $region2: #{tpu_custom_call.1} parent=1 // loop_pre_header
      _
    $region3: #{tpu_custom_call.1} parent=1 // loop_header
      %s18 = sphi 0, %s22
      %p19 = scmp.ge.s32.totalorder %s18, 4
      %s25 = sphi 0, %s37
      %s26 = sphi 0, %s33
      %s27 = sphi 0, %s25
      %s28 = sphi 0, %s26
      %s29 = sphi 0, %s27
      %s30 = sphi 0, %s28
      %s42 = sphi 0, %s44
      %s45 = sphi 0, %s42
      %s46 = sphi 0, %s45
      %s62 = sphi 0, %s46
      %s70 = sphi 0, %s72
      %s73 = sphi 0, %s70
      %s74 = sphi 0, %s73
      %s90 = sphi 0, %s74
      %s94 = sphi 0, %s94
      %s96 = sphi 0, %s94
      %s97 = sphi 0, %s96
      %s111 = sphi 0, %s97
      %s117 = sphi 0, %s119
      %s120 = sphi 0, %s117
      %s121 = sphi 0, %s120
      %s137 = sphi 0, %s121
    $region4: #{tpu_custom_call.1} parent=1 // loop_header_branch
      %21 = sbr.rel (%p19) target = $region8
    $region5: #{tpu_custom_call.1} parent=1 // loop_body
      %s23 = ssub.s32 %s18, 1
      %s24 = ssub.s32 %s18, 2
      %s31 = sadd.s32 1, %s26
      %p32 = scmp.ge.s32.totalorder %s31, 1
      %s33 = scalar_select %p32, 0, %s31
      %s34 = sadd.s32 1, %s25
      %s35 = scalar_select %p32, %s34, %s25
      %p36 = scmp.ge.s32.totalorder %s35, 2
      %s37 = scalar_select %p36, 0, %s35
      %s38 = sadd.s32 %s25, %s26
      %s39 = sadd.s32 %s37, %s33
      %s40 = ssub.s32 %s38, %s39
      %p41 = scmp.eq.s32.totalorder %s40, 0
      %s43 = sadd.s32 %s42, 1
      %s44 = scalar_select %p41, %s42, %s43
      %p47 = pneg %p41
      %p48 = scmp.eq.s32.totalorder %s18, 1
      %p49 = por %p47, %p48
      %p50 = scmp.ne.s32.totalorder %s42, %s45
      %p51 = scmp.eq.s32.totalorder %s18, 0
      %p52 = por %p50, %p51
      %p53 = scmp.ne.s32.totalorder %s42, %s45
      %p54 = scmp.eq.s32.totalorder %s23, 1
      %p55 = por %p53, %p54
      %p56 = scmp.ne.s32.totalorder %s45, %s46
      %p57 = scmp.eq.s32.totalorder %s23, 0
      %p58 = por %p56, %p57
      %p59 = scmp.ne.s32.totalorder %s45, %s46
      %p60 = scmp.eq.s32.totalorder %s24, 1
      %p61 = por %p59, %p60
      %p63 = scmp.ne.s32.totalorder %s46, %s62
      %p64 = scmp.eq.s32.totalorder %s24, 0
      %p65 = por %p63, %p64
      %s66 = sadd.s32 %s25, %s26
      %s67 = sadd.s32 %s37, %s33
      %s68 = ssub.s32 %s66, %s67
      %p69 = scmp.eq.s32.totalorder %s68, 0
      %s71 = sadd.s32 %s70, 1
      %s72 = scalar_select %p69, %s70, %s71
      %p75 = pneg %p69
      %p76 = scmp.eq.s32.totalorder %s18, 1
      %p77 = por %p75, %p76
      %p78 = scmp.ne.s32.totalorder %s70, %s73
      %p79 = scmp.eq.s32.totalorder %s18, 0
      %p80 = por %p78, %p79
      %p81 = scmp.ne.s32.totalorder %s70, %s73
      %p82 = scmp.eq.s32.totalorder %s23, 1
      %p83 = por %p81, %p82
      %p84 = scmp.ne.s32.totalorder %s73, %s74
      %p85 = scmp.eq.s32.totalorder %s23, 0
      %p86 = por %p84, %p85
      %p87 = scmp.ne.s32.totalorder %s73, %s74
      %p88 = scmp.eq.s32.totalorder %s24, 1
      %p89 = por %p87, %p88
      %p91 = scmp.ne.s32.totalorder %s74, %s90
      %p92 = scmp.eq.s32.totalorder %s24, 0
      %p93 = por %p91, %p92
      %s95 = sadd.s32 %s94, 1
      %p98 = scmp.eq.s32.totalorder %s18, 1
      %p99 = scmp.ne.s32.totalorder %s94, %s96
      %p100 = scmp.eq.s32.totalorder %s18, 0
      %p101 = por %p99, %p100
      %p102 = scmp.ne.s32.totalorder %s94, %s96
      %p103 = scmp.eq.s32.totalorder %s23, 1
      %p104 = por %p102, %p103
      %p105 = scmp.ne.s32.totalorder %s96, %s97
      %p106 = scmp.eq.s32.totalorder %s23, 0
      %p107 = por %p105, %p106
      %p108 = scmp.ne.s32.totalorder %s96, %s97
      %p109 = scmp.eq.s32.totalorder %s24, 1
      %p110 = por %p108, %p109
      %p112 = scmp.ne.s32.totalorder %s97, %s111
      %p113 = scmp.eq.s32.totalorder %s24, 0
      %p114 = por %p112, %p113
      %s115 = ssub.s32 %s25, %s37
      %p116 = scmp.eq.s32.totalorder %s115, 0
      %s118 = sadd.s32 %s117, 1
      %s119 = scalar_select %p116, %s117, %s118
      %p122 = pneg %p116
      %p123 = scmp.eq.s32.totalorder %s18, 1
      %p124 = por %p122, %p123
      %p125 = scmp.ne.s32.totalorder %s117, %s120
      %p126 = scmp.eq.s32.totalorder %s18, 0
      %p127 = por %p125, %p126
      %p128 = scmp.ne.s32.totalorder %s117, %s120
      %p129 = scmp.eq.s32.totalorder %s23, 1
      %p130 = por %p128, %p129
      %p131 = scmp.ne.s32.totalorder %s120, %s121
      %p132 = scmp.eq.s32.totalorder %s23, 0
      %p133 = por %p131, %p132
      %p134 = scmp.ne.s32.totalorder %s120, %s121
      %p135 = scmp.eq.s32.totalorder %s24, 1
      %p136 = por %p134, %p135
      %p138 = scmp.ne.s32.totalorder %s121, %s137
      %p139 = scmp.eq.s32.totalorder %s24, 0
      %p140 = por %p138, %p139
      %p141 = scmp.le.s32.totalorder 1, %s18
      %p142 = scmp.lt.s32.totalorder %s18, 3
      %p143 = pnand %p141, %p142
      %p144 = pneg %p143
      // Predicated region
      $region9: #{tpu_custom_call.1} parent=5 // pred_check
        _
      $region10: #{tpu_custom_call.1} parent=5 // pred_check_branch
        %146 = sbr.rel (%p143) target = $region12
      $region11: #{tpu_custom_call.1} parent=5 // pred_region
        %s147 = ssub.s32 %s18, 1
        // Predicated region
        $region13: #{tpu_custom_call.1} parent=11 // pred_check
          %p148 = pneg %p107
        $region14: #{tpu_custom_call.1} parent=11 // pred_check_branch
          %150 = sbr.rel (%p148) target = $region16
        $region15: #{tpu_custom_call.1} parent=11 // pred_region
          %s152 = ssub.s32 2048, 2048
          %153 = vsyncadd [#allocation8], %s152
          %s154 = sshll.u32 [#allocation9], 4
          %s155 = int_to_ptr.vmem [resolvable:$true] %s154
          %160 = dma.hbm_to_vmem [thread:$0]  %s2, 2048, %s155, [#allocation8], 128, 128, 8
        $region16: #{tpu_custom_call.1} parent=11 // pred_fallthru
          _
      $region12: #{tpu_custom_call.1} parent=5 // pred_fallthru
        _
      %p161 = scmp.lt.s32.totalorder %s18, 2
      // Predicated region
      $region17: #{tpu_custom_call.1} parent=5 // pred_check
        %p162 = pneg %p161
      $region18: #{tpu_custom_call.1} parent=5 // pred_check_branch
        %164 = sbr.rel (%p162) target = $region20
      $region19: #{tpu_custom_call.1} parent=5 // pred_region
        // Predicated region
        $region21: #{tpu_custom_call.1} parent=19 // pred_check
          %p165 = pneg %p52
        $region22: #{tpu_custom_call.1} parent=19 // pred_check_branch
          %167 = sbr.rel (%p165) target = $region24
        $region23: #{tpu_custom_call.1} parent=19 // pred_region
          %s168 = sand.u32 %s42, 1
          %s169 = scalar_lea.sflag [#allocation5], %s168
          %s170 = sand.u32 %s42, 1
          %s171 = smul.addr %s170, 16
          %s172 = scalar_lea.vmem [#allocation4], %s171
          %s173 = sadd.s32 %s25, %s26
          %s174 = smul.u32 2, %s173
          %s176 = ssub.s32 256, 256
          %177 = vsyncadd %s169, %s176
          %s178 = smul.addr %s174, 128
          %s179 = scalar_lea.hbm %s0, %s178
          %s180 = sshll.u32 %s172, 4
          %s181 = int_to_ptr.vmem [resolvable:$true] %s180
          %186 = dma.hbm_to_vmem [thread:$0]  %s179, 256, %s181, %s169, 128, 128, 8
        $region24: #{tpu_custom_call.1} parent=19 // pred_fallthru
          _
        // Predicated region
        $region25: #{tpu_custom_call.1} parent=19 // pred_check
          %p187 = pneg %p80
        $region26: #{tpu_custom_call.1} parent=19 // pred_check_branch
          %189 = sbr.rel (%p187) target = $region28
        $region27: #{tpu_custom_call.1} parent=19 // pred_region
          %s190 = sand.u32 %s18, 1
          %s191 = scalar_lea.sflag [#allocation8], %s190
          %s192 = sand.u32 %s70, 1
          %s193 = smul.addr %s192, 16
          %s194 = scalar_lea.vmem [#allocation7], %s193
          %s195 = sadd.s32 %s25, %s26
          %s196 = smul.u32 2, %s195
          %s198 = ssub.s32 256, 256
          %199 = vsyncadd %s191, %s198
          %s200 = smul.addr %s196, 128
          %s201 = scalar_lea.hbm %s1, %s200
          %s202 = sshll.u32 %s194, 4
          %s203 = int_to_ptr.vmem [resolvable:$true] %s202
          %208 = dma.hbm_to_vmem [thread:$0]  %s201, 256, %s203, %s191, 128, 128, 8
        $region28: #{tpu_custom_call.1} parent=19 // pred_fallthru
          _
      $region20: #{tpu_custom_call.1} parent=5 // pred_fallthru
        _
      %p209 = scmp.le.s32.totalorder 1, %s18
      %p210 = scmp.lt.s32.totalorder %s18, 3
      %p211 = pnand %p209, %p210
      %p212 = pneg %p211
      // Predicated region
      $region29: #{tpu_custom_call.1} parent=5 // pred_check
        _
      $region30: #{tpu_custom_call.1} parent=5 // pred_check_branch
        %214 = sbr.rel (%p211) target = $region32
      $region31: #{tpu_custom_call.1} parent=5 // pred_region
        %s215 = ssub.s32 %s18, 1
        %s216 = sand.u32 %s45, 1
        %s217 = scalar_lea.sflag [#allocation5], %s216
        %s218 = sand.u32 %s45, 1
        %s219 = smul.addr %s218, 16
        %s220 = scalar_lea.vmem [#allocation4], %s219
        // Predicated region
        $region33: #{tpu_custom_call.1} parent=31 // pred_check
          %p221 = pneg %p58
        $region34: #{tpu_custom_call.1} parent=31 // pred_check_branch
          %223 = sbr.rel (%p221) target = $region36
        $region35: #{tpu_custom_call.1} parent=31 // pred_region
          %224 = dma.done %s217, 256
        $region36: #{tpu_custom_call.1} parent=31 // pred_fallthru
          _
        %s225 = sand.u32 %s23, 1
        %s226 = scalar_lea.sflag [#allocation8], %s225
        %s227 = sand.u32 %s73, 1
        %s228 = smul.addr %s227, 16
        %s229 = scalar_lea.vmem [#allocation7], %s228
        // Predicated region
        $region37: #{tpu_custom_call.1} parent=31 // pred_check
          %p230 = pneg %p86
        $region38: #{tpu_custom_call.1} parent=31 // pred_check_branch
          %232 = sbr.rel (%p230) target = $region40
        $region39: #{tpu_custom_call.1} parent=31 // pred_region
          %233 = dma.done %s226, 256
        $region40: #{tpu_custom_call.1} parent=31 // pred_fallthru
          _
        // Predicated region
        $region41: #{tpu_custom_call.1} parent=31 // pred_check
          %p234 = pneg %p107
        $region42: #{tpu_custom_call.1} parent=31 // pred_check_branch
          %236 = sbr.rel (%p234) target = $region44
        $region43: #{tpu_custom_call.1} parent=31 // pred_region
          %237 = dma.done [#allocation8], 2048
        $region44: #{tpu_custom_call.1} parent=31 // pred_fallthru
          _
        %s238 = sand.u32 %s45, 1
        %s239 = scalar_lea.sflag [#allocation5], %s238
        %s240 = sand.u32 %s45, 1
        %s241 = smul.addr %s240, 16
        %s242 = scalar_lea.vmem [#allocation4], %s241
        %p243 = pneg %p58
        %p244 = pneg %p55
        %s245 = sand.u32 %s23, 1
        %s246 = scalar_lea.sflag [#allocation8], %s245
        %s247 = sand.u32 %s73, 1
        %s248 = smul.addr %s247, 16
        %s249 = scalar_lea.vmem [#allocation7], %s248
        %p250 = pneg %p86
        %p251 = pneg %p83
        %p252 = pneg %p107
        %p253 = pneg %p104
        %p254 = pneg %p133
        %p255 = pneg %p130
        %s256 = sand.u32 %s120, 1
        %s257 = scalar_lea.sflag [#allocation6], %s256
        %s258 = sand.u32 %s120, 1
        %s259 = smul.addr %s258, 8
        %s260 = scalar_lea.vmem [#allocation10], %s259
        %s261 = sadd.s32 %s27, %s28
        %s262 = smul.u32 2, %s261
        %s263 = sadd.s32 %s27, %s28
        %s264 = smul.u32 2, %s263
        %p265 = scmp.eq.s32.totalorder %s28, 0
        // Predicated region
        $region45: #{tpu_custom_call.1} parent=31 // pred_check
          %p266 = pneg %p265
        $region46: #{tpu_custom_call.1} parent=31 // pred_check_branch
          %268 = sbr.rel (%p266) target = $region48
        $region47: #{tpu_custom_call.1} parent=31 // pred_region
          %269 = vst [vmem:[#allocation2] sm:$0x1] 0.0
          %270 = vst [vmem:[#allocation3] sm:$0x1] 0.0
        $region48: #{tpu_custom_call.1} parent=31 // pred_fallthru
          _
        %v271 = vld [vmem:[%s220] sm:$0xff]
        %v272 = vld [vmem:[%s220 + $0x8] sm:$0xff]
        %v273 = vld [vmem:[%s229] sm:$0xff]
        %v274 = vld [vmem:[%s229 + $0x8] sm:$0xff]
        %v275 = vsub.f32 1.0, %v271
        %v276 = vsub.f32 1.0, %v272
        %v277 = vsub.f32 1.0, %v273
        %v278 = vsub.f32 1.0, %v274
        %v279 = vmul.f32 %v275, %v275
        %v280 = vmul.f32 %v276, %v276
        %v281 = vadd.f32 %v271, 1e-10
        %v282 = vadd.f32 %v272, 1e-10
        %v283 = vlog2.pop %v281
        %v284 = vmul.f32 %v283, 0.6931472
        %v285 = vlog2.pop %v282
        %v286 = vmul.f32 %v285, 0.6931472
        %v287 = vmul.f32 %v279, %v284
        %v288 = vmul.f32 %v280, %v286
        %v289 = vmul.f32 %v287, %v273
        %v290 = vmul.f32 %v288, %v274
        %v291 = vmul.f32 %v271, %v271
        %v292 = vmul.f32 %v272, %v272
        %v293 = vadd.f32 %v275, 1e-10
        %v294 = vadd.f32 %v276, 1e-10
        %v295 = vlog2.pop %v293
        %v296 = vmul.f32 %v295, 0.6931472
        %v297 = vlog2.pop %v294
        %v298 = vmul.f32 %v297, 0.6931472
        %v299 = vmul.f32 %v291, %v296
        %v300 = vmul.f32 %v292, %v298
        %v301 = vmul.f32 %v299, %v277
        %v302 = vmul.f32 %v300, %v278
        %v303 = vadd.f32 %v289, %v301
        %v304 = vadd.f32 %v290, %v302
        %v305 = vld [vmem:[#allocation2] sm:$0x1]
        %v306 = vadd.f32 %v303, %v304
        %v307 = vrot.slane %v306, 4
        %v308 = vadd.f32 %v306, %v307
        %v309 = vrot.slane %v308, 2
        %v310 = vadd.f32 %v308, %v309
        %v311 = vrot.slane %v310, 1
        %v312 = vadd.f32 %v310, %v311
        %v313 = vadd.f32 %v305, %v312
        %314 = vst [vmem:[#allocation2] sm:$0x1] %v313
        %315 = vmax.xlane.f32.xlu0 %v271
        %v316 = vpop.xlane.xlu0 %315
        %317 = vmax.xlane.f32.xlu0 %v272
        %v318 = vpop.xlane.xlu0 %317
        %v319 = vsub.f32 %v271, %v316
        %v320 = vsub.f32 %v272, %v318
        %v321 = vmul.f32 %v319, 1.442695
        %v322 = vpow.pop %v321
        %v323 = vmul.f32 %v320, 1.442695
        %v324 = vpow.pop %v323
        %325 = vadd.xlane.f32.xlu0 %v322
        %v326 = vpop.xlane.xlu0 %325
        %327 = vadd.xlane.f32.xlu0 %v324
        %v328 = vpop.xlane.xlu0 %327
        %v329 = vrcp.pop %v326
        %v330 = vrcp.pop %v328
        %v331 = vmul.f32 %v322, %v329
        %v332 = vmul.f32 %v324, %v330
        %333 = vmax.xlane.f32.xlu0 %v273
        %v334 = vpop.xlane.xlu0 %333
        %335 = vmax.xlane.f32.xlu0 %v274
        %v336 = vpop.xlane.xlu0 %335
        %v337 = vsub.f32 %v273, %v334
        %v338 = vsub.f32 %v274, %v336
        %v339 = vmul.f32 %v337, 1.442695
        %v340 = vpow.pop %v339
        %v341 = vmul.f32 %v338, 1.442695
        %v342 = vpow.pop %v341
        %343 = vadd.xlane.f32.xlu0 %v340
        %v344 = vpop.xlane.xlu0 %343
        %345 = vadd.xlane.f32.xlu0 %v342
        %v346 = vpop.xlane.xlu0 %345
        %v347 = vrcp.pop %v344
        %v348 = vrcp.pop %v346
        %v349 = vmul.f32 %v340, %v347
        %v350 = vmul.f32 %v342, %v348
        %v351 = vsub.f32 %v331, %v349
        %v352 = vsub.f32 %v332, %v350
        %v353 = vld [vmem:[#allocation9] sm:$0xff]
        %v354 = vld [vmem:[#allocation9 + $0x8] sm:$0xff]
        %v355 = vld [vmem:[#allocation9 + $0x10] sm:$0xff]
        %v356 = vld [vmem:[#allocation9 + $0x18] sm:$0xff]
        %v357 = vld [vmem:[#allocation9 + $0x20] sm:$0xff]
        %v358 = vld [vmem:[#allocation9 + $0x28] sm:$0xff]
        %v359 = vld [vmem:[#allocation9 + $0x30] sm:$0xff]
        %v360 = vld [vmem:[#allocation9 + $0x38] sm:$0xff]
        %v361 = vld [vmem:[#allocation9 + $0x40] sm:$0xff]
        %v362 = vld [vmem:[#allocation9 + $0x48] sm:$0xff]
        %v363 = vld [vmem:[#allocation9 + $0x50] sm:$0xff]
        %v364 = vld [vmem:[#allocation9 + $0x58] sm:$0xff]
        %v365 = vld [vmem:[#allocation9 + $0x60] sm:$0xff]
        %v366 = vld [vmem:[#allocation9 + $0x68] sm:$0xff]
        %v367 = vld [vmem:[#allocation9 + $0x70] sm:$0xff]
        %v368 = vld [vmem:[#allocation9 + $0x78] sm:$0xff]
        %369 = vmatprep.subr.mxu0 0.0
        %370 = vmatpush1.msra.mxu0 %v353
        %371 = vmatprep.subr.mxu0 0.0
        %372 = vmatpush1.msra.mxu0 %v354
        %373 = vmatprep.subr.mxu0 0.0
        %374 = vmatpush1.msra.mxu0 %v355
        %375 = vmatprep.subr.mxu0 0.0
        %376 = vmatpush1.msra.mxu0 %v356
        %377 = vmatprep.subr.mxu0 0.0
        %378 = vmatpush1.msra.mxu0 %v357
        %379 = vmatprep.subr.mxu0 0.0
        %380 = vmatpush1.msra.mxu0 %v358
        %381 = vmatprep.subr.mxu0 0.0
        %382 = vmatpush1.msra.mxu0 %v359
        %383 = vmatprep.subr.mxu0 0.0
        %384 = vmatpush1.msra.mxu0 %v360
        %385 = vmatprep.subr.mxu0 0.0
        %386 = vmatpush1.msra.mxu0 %v361
        %387 = vmatprep.subr.mxu0 0.0
        %388 = vmatpush1.msra.mxu0 %v362
        %389 = vmatprep.subr.mxu0 0.0
        %390 = vmatpush1.msra.mxu0 %v363
        %391 = vmatprep.subr.mxu0 0.0
        %392 = vmatpush1.msra.mxu0 %v364
        %393 = vmatprep.subr.mxu0 0.0
        %394 = vmatpush1.msra.mxu0 %v365
        %395 = vmatprep.subr.mxu0 0.0
        %396 = vmatpush1.msra.mxu0 %v366
        %397 = vmatprep.subr.mxu0 0.0
        %398 = vmatpush1.msra.mxu0 %v367
        %399 = vmatprep.subr.mxu0 0.0
        %400 = vmatpush1.msra.mxu0 %v368
        %401 = vmatprep.subr.mxu0 0.0
        %402 = vmatpush1.msra.mxu0 0.0
        %403 = vmatprep.subr.mxu0 0.0
        %404 = vmatpush1.msra.mxu0 0.0
        %405 = vmatprep.subr.mxu0 0.0
        %406 = vmatpush1.msra.mxu0 0.0
        %407 = vmatprep.subr.mxu0 0.0
        %408 = vmatpush1.msra.mxu0 0.0
        %409 = vmatprep.subr.mxu0 0.0
        %410 = vmatpush1.msra.mxu0 0.0
        %411 = vmatprep.subr.mxu0 0.0
        %412 = vmatpush1.msra.mxu0 0.0
        %413 = vmatprep.subr.mxu0 0.0
        %414 = vmatpush1.msra.mxu0 0.0
        %415 = vmatprep.subr.mxu0 0.0
        %416 = vmatpush1.msra.mxu0 0.0
        %417 = vmatprep.subr.mxu0 0.0
        %418 = vmatpush1.msra.mxu0 0.0
        %419 = vmatprep.subr.mxu0 0.0
        %420 = vmatpush1.msra.mxu0 0.0
        %421 = vmatprep.subr.mxu0 0.0
        %422 = vmatpush1.msra.mxu0 0.0
        %423 = vmatprep.subr.mxu0 0.0
        %424 = vmatpush1.msra.mxu0 0.0
        %425 = vmatprep.subr.mxu0 0.0
        %426 = vmatpush1.msra.mxu0 0.0
        %427 = vmatprep.subr.mxu0 0.0
        %428 = vmatpush1.msra.mxu0 0.0
        %429 = vmatprep.subr.mxu0 0.0
        %430 = vmatpush1.msra.mxu0 0.0
        %431 = vmatprep.subr.mxu0 0.0
        %432 = vmatpush1.msra.mxu0 0.0
        %433 = vmatprep.mubr.f32.mxu0 0.0
        %434 = vmatmul.mubr.f32.gmra.mrb[0].mxu0 %v351
        %v435 = vpop.f32.mrb[0].mxu0
        %v436 = vadd.f32 0.0, %v435
        %v437 = vpop.f32.mrb[0].mxu0
        %438 = vmatprep.mubr.f32.mxu0 0.0
        %439 = vmatmul.mubr.f32.gmra.mrb[0].mxu0 %v352
        %v440 = vpop.f32.mrb[0].mxu0
        %v441 = vadd.f32 0.0, %v440
        %v442 = vpop.f32.mrb[0].mxu0
        %443 = vdwg.mxu0
        %v444 = vld [vmem:[#allocation3] sm:$0x1]
        %v445 = vmul.f32 %v436, %v436
        %v446 = vmul.f32 %v441, %v441
        %v447 = vadd.f32 %v445, %v446
        %v448 = vrot.slane %v447, 4
        %v449 = vadd.f32 %v447, %v448
        %v450 = vrot.slane %v449, 2
        %v451 = vadd.f32 %v449, %v450
        %v452 = vrot.slane %v451, 1
        %v453 = vadd.f32 %v451, %v452
        %v454 = vadd.f32 %v444, %v453
        %455 = vst [vmem:[#allocation3] sm:$0x1] %v454
        // Predicated region
        $region49: #{tpu_custom_call.1} parent=31 // pred_check
          %p456 = pneg %p265
        $region50: #{tpu_custom_call.1} parent=31 // pred_check_branch
          %458 = sbr.rel (%p456) target = $region52
        $region51: #{tpu_custom_call.1} parent=31 // pred_region
          %v459 = vlaneseq
          %v460 = vshrl.u32 %v459, 7
          %vm461 = vcmp.eq.s32.totalorder %v460, 0
          %v462 = vsel %vm461, 1, 0
          %v463 = vcvt.s32.f32 %v462
          %vm464 = vcmp.eq.s32.totalorder %v460, 1
          %v465 = vsel %vm464, 1, 0
          %v466 = vcvt.s32.f32 %v465
          %v467 = vld [vmem:[#allocation2] sm:$0x1]
          %v468 = vmul.f32 %v467, -0.041666668
          %v470 = vlaneseq
          %v471 = vshrl.u32 %v470, 7
          %v472 = vsub.s32 0, %v471
          %v473 = vrot.slane %v468, %v472
          %v475 = vmul.f32 %v463, %v473
          %v476 = vld [vmem:[#allocation3] sm:$0x1]
          %v478 = vlaneseq
          %v479 = vshrl.u32 %v478, 7
          %v480 = vsub.s32 0, %v479
          %v481 = vrot.slane %v476, %v480
          %v483 = vmul.f32 %v466, %v481
          %v484 = vadd.f32 %v475, %v483
          %485 = vst [vmem:[%s260] sm:$0xff] %v484
        $region52: #{tpu_custom_call.1} parent=31 // pred_fallthru
          _
        %s486 = sand.u32 %s120, 1
        %s487 = scalar_lea.sflag [#allocation6], %s486
        %s488 = sand.u32 %s120, 1
        %s489 = smul.addr %s488, 8
        %s490 = scalar_lea.vmem [#allocation10], %s489
        // Predicated region
        $region53: #{tpu_custom_call.1} parent=31 // pred_check
          %p491 = pneg %p130
        $region54: #{tpu_custom_call.1} parent=31 // pred_check_branch
          %493 = sbr.rel (%p491) target = $region56
        $region55: #{tpu_custom_call.1} parent=31 // pred_region
          %s495 = ssub.s32 128, 128
          %496 = vsyncadd %s487, %s495
          %s497 = smul.addr %s27, 128
          %s498 = scalar_lea.hbm %s3, %s497
          %s500 = sshll.u32 %s490, 4
          %s501 = int_to_ptr.vmem [resolvable:$true] %s500
          %503 = dma.vmem_to_hbm [thread:$0]  %s501, 128, %s498, %s487
        $region56: #{tpu_custom_call.1} parent=31 // pred_fallthru
          _
      $region32: #{tpu_custom_call.1} parent=5 // pred_fallthru
        _
      %p504 = scmp.le.s32.totalorder 2, %s18
      // Predicated region
      $region57: #{tpu_custom_call.1} parent=5 // pred_check
        %p505 = pneg %p504
      $region58: #{tpu_custom_call.1} parent=5 // pred_check_branch
        %507 = sbr.rel (%p505) target = $region60
      $region59: #{tpu_custom_call.1} parent=5 // pred_region
        %s508 = ssub.s32 %s18, 2
        // Predicated region
        $region61: #{tpu_custom_call.1} parent=59 // pred_check
          %p509 = pneg %p136
        $region62: #{tpu_custom_call.1} parent=59 // pred_check_branch
          %511 = sbr.rel (%p509) target = $region64
        $region63: #{tpu_custom_call.1} parent=59 // pred_region
          %s512 = sand.u32 %s121, 1
          %s513 = scalar_lea.sflag [#allocation6], %s512
          %s514 = sand.u32 %s121, 1
          %s515 = smul.addr %s514, 8
          %s516 = scalar_lea.vmem [#allocation10], %s515
          %517 = dma.done %s513, 128
        $region64: #{tpu_custom_call.1} parent=59 // pred_fallthru
          _
      $region60: #{tpu_custom_call.1} parent=5 // pred_fallthru
        _
    $region6: #{tpu_custom_call.1} parent=1 // loop_footer
      %s22 = sadd.s32 1, %s18
    $region7: #{tpu_custom_call.1} parent=1 // loop_footer_branch
      %17 = sbr.rel target = $region3
    $region8: #{tpu_custom_call.1} parent=1 // loop_exit
      _
    %518 = vsyncpa [#allocation5], 1
    %s519 = scalar_lea.sflag [#allocation5], 1
    %520 = vsyncpa %s519, 1
    %521 = vsyncpa [#allocation8], 1
    %s522 = scalar_lea.sflag [#allocation8], 1
    %523 = vsyncpa %s522, 1
    %524 = vsyncpa [#allocation6], 1
    %s525 = scalar_lea.sflag [#allocation6], 1
    %526 = vsyncpa %s525, 1

</llo_original>
